<compile_context>
chip_gen: v5e
topology: v5e:2x2
jax: 0.10.0
libtpu: 0.0.40
codegen_flags: <defaults>
</compile_context>

<pallas_src>
import jax
import jax.numpy as jnp
from jax.experimental import pallas as pl
from jax.experimental.pallas import tpu as pltpu


def _copy_kernel(x_ref, o_ref):
    # One (tile_rows, tile_cols) lane-dense slab of the flattened tensor.
    o_ref[...] = x_ref[...]


def _pick_tiles(R, HW, itemsize, max_block_bytes):
    """Choose a (tile_rows, tile_cols) block for a pure 2-D copy.

    Keeps the last axis lane-dense (multiple of 128 or the full dim) and the
    row axis sublane-aligned (multiple of 8 or the full dim), never exceeding
    max_block_bytes, so the double-buffered in+out blocks stay inside every
    generation's VMEM budget (v7x: 64 MiB physical, v5e: 16 MiB default scope).
    """
    # --- lane (last) axis ---
    if HW <= 128 or 8 * HW * itemsize <= max_block_bytes:
        tile_cols = HW  # full width (also covers HW < 128)
    else:
        # Huge-HW case: tile the lane axis in multiples of 128.
        budget_cols = max(128, (max_block_bytes // (8 * itemsize)) // 128 * 128)
        tile_cols = min(budget_cols, (HW // 128) * 128)
        t = tile_cols
        while t >= 128:  # prefer an even split (no masked partial stores)
            if HW % t == 0:
                tile_cols = t
                break
            t -= 128

    # --- sublane (row) axis ---
    if R <= 8:
        tile_rows = R  # full dim is always legal
    else:
        budget_rows = max(8, (max_block_bytes // (tile_cols * itemsize)) // 8 * 8)
        tile_rows = min(budget_rows, (R // 8) * 8)
        t = tile_rows
        while t >= 8:  # prefer an even split when available
            if R % t == 0:
                tile_rows = t
                break
            t -= 8
        # No even divisor found -> keep the budget-sized tile; the grid uses
        # pl.cdiv so the last block is a (cheap) masked partial block instead
        # of overshooting max_block_bytes.
    return tile_rows, tile_cols


def height_compression(x, *, materialize=False, max_block_bytes=8 * 1024 * 1024):
    """Dense [N, C, D, H, W] -> [N, C*D, H, W]  (exact PyTorch .view semantics).

    materialize=False (default): metadata-only reshape, zero HBM traffic.
    materialize=True: produce a fresh buffer via a single lane-dense Pallas
    copy pass (only needed if a downstream consumer requires a new buffer).
    """
    N, C, D, H, W = x.shape
    CD, HW = C * D, H * W

    if not materialize:
        # Contiguous, same-order dim merge on a row-major array: pure view.
        return jnp.reshape(x, (N, CD, H, W))

    itemsize = jnp.dtype(x.dtype).itemsize
    R = N * CD

    # Metadata-only view: collapse N into the row axis, flatten (H, W) so the
    # lane axis is large and dense.
    x2 = jnp.reshape(x, (R, HW))

    tile_rows, tile_cols = _pick_tiles(R, HW, itemsize, max_block_bytes)
    grid = (pl.cdiv(R, tile_rows), pl.cdiv(HW, tile_cols))

    block_bytes = tile_rows * tile_cols * itemsize
    # in + out, double-buffered, plus headroom; floor keeps tiny test shapes
    # comfortable, cap keeps us inside v7x's 64 MiB physical VMEM.
    vmem_limit = int(min(48 * 1024 * 1024,
                         max(16 * 1024 * 1024, 4 * block_bytes + 4 * 1024 * 1024)))
    total_bytes = R * HW * itemsize

    out2 = pl.pallas_call(
        _copy_kernel,
        out_shape=jax.ShapeDtypeStruct((R, HW), x.dtype),
        grid=grid,
        in_specs=[pl.BlockSpec((tile_rows, tile_cols), lambda ri, ci: (ri, ci))],
        out_specs=pl.BlockSpec((tile_rows, tile_cols), lambda ri, ci: (ri, ci)),
        compiler_params=pltpu.CompilerParams(
            dimension_semantics=("parallel", "parallel"),
            vmem_limit_bytes=vmem_limit,
        ),
        cost_estimate=pl.CostEstimate(
            flops=0, transcendentals=0, bytes_accessed=2 * total_bytes
        ),
    )(x2)

    # Metadata-only view back to the 4-D result.
    return jnp.reshape(out2, (N, CD, H, W))


def densify_sparse(coords, feats, N, C, D, H, W, dtype=jnp.float32):
    """Plain-JAX stand-in for spconv SparseConvTensor.dense().

    coords: [M, 4] int32 rows of (batch, d, h, w); feats: [M, C].
    Scatters directly into the NCDHW layout so the downstream
    HeightCompression view is metadata-only (no NDHWC build + transpose).
    """
    # TODO(synk): the data-dependent sparse->dense scatter stays in plain JAX;
    # a Pallas version would need a manual DMA-gather/scatter over voxel ids.
    dense = jnp.zeros((N, C, D, H, W), dtype=dtype)
    b, d, h, w = coords[:, 0], coords[:, 1], coords[:, 2], coords[:, 3]
    # Advanced indices (b | d,h,w) separated by the ':' slice -> result dims
    # (M, C), matching feats.
    dense = dense.at[b, :, d, h, w].set(feats.astype(dtype))
    return dense


if __name__ == "__main__":
    key = jax.random.PRNGKey(0)
    N, C, D, H, W = 2, 4, 2, 16, 16
    M = 50  # number of active (sparse) voxels

    kb, kd, kh, kw, kf = jax.random.split(key, 5)
    coords = jnp.stack(
        [
            jax.random.randint(kb, (M,), 0, N),
            jax.random.randint(kd, (M,), 0, D),
            jax.random.randint(kh, (M,), 0, H),
            jax.random.randint(kw, (M,), 0, W),
        ],
        axis=1,
    ).astype(jnp.int32)
    feats = jax.random.normal(kf, (M, C), dtype=jnp.float32)

    # .dense() equivalent (glue, plain JAX) — already in NCDHW layout.
    dense = jax.block_until_ready(densify_sparse(coords, feats, N, C, D, H, W))

    # HeightCompression forward:
    #   (a) steady-state zero-copy path (pure view),
    #   (b) materializing Pallas copy kernel (exercised + validated here).
    out_view = height_compression(dense)
    out_kernel = jax.block_until_ready(height_compression(dense, materialize=True))

    # Reference: exactly the PyTorch view semantics.
    ref = jnp.reshape(dense, (N, C * D, H, W))
    assert out_kernel.shape == (N, C * D, H, W)
    assert out_kernel.dtype == dense.dtype
    assert jnp.array_equal(out_kernel, ref)
    assert jnp.array_equal(out_view, ref)

    print("KERNEL_OK")
</pallas_src>

<mosaic_0001>
module attributes {stable_mosaic.version = 11 : i64} {
  func.func @_copy_kernel(%arg0: i32, %arg1: i32, %arg2: memref<16x256xf32, #tpu.memory_space<vmem>>, %arg3: memref<16x256xf32, #tpu.memory_space<vmem>>) attributes {dimension_semantics = [#tpu.dimension_semantics<parallel>, #tpu.dimension_semantics<parallel>], iteration_bounds = array<i64: 1, 1>, scalar_prefetch = 0 : i64, scratch_operands = 0 : i64, tpu.core_type = #tpu.core_type<tc>, window_params = [{transform_indices = @transform_0, window_bounds = array<i64: 16, 256>}, {transform_indices = @transform_1, window_bounds = array<i64: 16, 256>}]} {
    %c0 = arith.constant 0 : index
    %c0_0 = arith.constant 0 : index
    %0 = vector.load %arg2[%c0, %c0_0] : memref<16x256xf32, #tpu.memory_space<vmem>>, vector<16x256xf32>
    %c0_1 = arith.constant 0 : index
    %c0_2 = arith.constant 0 : index
    %1 = vector.load %arg3[%c0_1, %c0_2] : memref<16x256xf32, #tpu.memory_space<vmem>>, vector<16x256xf32>
    tpu.vector_store %arg3[%c0_1, %c0_2], %0 {strides = array<i32>} : memref<16x256xf32, #tpu.memory_space<vmem>>, vector<16x256xf32>,
    return
  }
  func.func @transform_0(%arg0: i32, %arg1: i32) -> (i32, i32) {
    %c0_i32 = arith.constant 0 : i32
    return %arg0, %arg1 : i32, i32
  }
  func.func @transform_1(%arg0: i32, %arg1: i32) -> (i32, i32) {
    %c0_i32 = arith.constant 0 : i32
    return %arg0, %arg1 : i32, i32
  }
}

</mosaic_0001>

<llo_original>
// kernel: tpu_custom_call.1
$region0: #{tpu_custom_call.1}
  #allocation0 [shape = 'u32[]', space=smem, size = 0x4, offset = 0x4, fixed_abs, tag = 'smem constant byte address 0x4 - core index']
  #allocation1 [shape = 'u32[72,128]{1,0:T(1,128)}', space=vmem, size = 0x9000, scoped, tag = 'internal scratch']
  %s0 = inlined_call_operand.hbm [shape: f32[16,256], index: 0, kind: input, shape index: {}]
  %s1 = inlined_call_operand.hbm [shape: f32[16,256], index: 1, kind: output, shape index: {}]
  %s2 = sld [smem:[#allocation0]]
  $region18: #{tpu_custom_call.1} parent=0
    _
  %s4 = ssub.s32 1, %s2
  %s5 = scalar_select 0, %s4, %s2
  $region1: #{tpu_custom_call.1} parent=0
    #allocation2 [shape = 'u8[16384]{0}', space=vmem, size = 0x4000, scoped, tag = 'input window, operand 0, single buffered']
    #allocation3 [shape = 's32[1]{0}', space=sflag, size = 0x4, scoped, tag = 'scoped memory for tpu_custom_call.1']
    #allocation4 [shape = 's32[1]{0}', space=sflag, size = 0x4, scoped, tag = 'scoped memory for tpu_custom_call.1']
    #allocation5 [shape = 'u8[16384]{0}', space=vmem, size = 0x4000, scoped, tag = 'output window, operand 0, single buffered']
    %6 = vsyncpa [#allocation3], 0
    %7 = vsyncpa [#allocation4], 0
    // Predicated region
    $region2: #{tpu_custom_call.1} parent=1 // pred_check
      _
    $region3: #{tpu_custom_call.1} parent=1 // pred_check_branch
      %9 = sbr.rel (0) target = $region5
    $region4: #{tpu_custom_call.1} parent=1 // pred_region
      %11 = vsyncadd [#allocation3], 0
      %s12 = sshll.u32 %s0, 4
      %s13 = int_to_ptr.hbm [resolvable:$true] %s12
      %s14 = sshll.u32 [#allocation2], 4
      %s15 = int_to_ptr.vmem [resolvable:$true] %s14
      %20 = dma.hbm_to_vmem [thread:$0]  %s13, 512, %s15, [#allocation3], 256, 256, 16
    $region5: #{tpu_custom_call.1} parent=1 // pred_fallthru
      _
    // Predicated region
    $region6: #{tpu_custom_call.1} parent=1 // pred_check
      _
    $region7: #{tpu_custom_call.1} parent=1 // pred_check_branch
      %22 = sbr.rel (0) target = $region9
    $region8: #{tpu_custom_call.1} parent=1 // pred_region
      %24 = dma.done [#allocation3], 512
    $region9: #{tpu_custom_call.1} parent=1 // pred_fallthru
      _
    %v25 = vld [vmem:[#allocation2] sm:$0xff]
    %v26 = vld [vmem:[#allocation2 + $0x8] sm:$0xff]
    %v27 = vld [vmem:[#allocation2 + $0x10] sm:$0xff]
    %v28 = vld [vmem:[#allocation2 + $0x18] sm:$0xff]
    %29 = vst [vmem:[#allocation5] sm:$0xff] %v25
    %30 = vst [vmem:[#allocation5 + $0x8] sm:$0xff] %v26
    %31 = vst [vmem:[#allocation5 + $0x10] sm:$0xff] %v27
    %32 = vst [vmem:[#allocation5 + $0x18] sm:$0xff] %v28
    // Predicated region
    $region10: #{tpu_custom_call.1} parent=1 // pred_check
      _
    $region11: #{tpu_custom_call.1} parent=1 // pred_check_branch
      %34 = sbr.rel (0) target = $region13
    $region12: #{tpu_custom_call.1} parent=1 // pred_region
      %36 = vsyncadd [#allocation4], 0
      %s37 = sshll.u32 [#allocation5], 4
      %s38 = int_to_ptr.vmem [resolvable:$true] %s37
      %s39 = sshll.u32 %s1, 4
      %s40 = int_to_ptr.hbm [resolvable:$true] %s39
      %45 = dma.vmem_to_hbm [thread:$0]  %s38, 512, %s40, [#allocation4], 256, 256, 16
    $region13: #{tpu_custom_call.1} parent=1 // pred_fallthru
      _
    // Predicated region
    $region14: #{tpu_custom_call.1} parent=1 // pred_check
      _
    $region15: #{tpu_custom_call.1} parent=1 // pred_check_branch
      %47 = sbr.rel (0) target = $region17
    $region16: #{tpu_custom_call.1} parent=1 // pred_region
      %49 = dma.done [#allocation4], 512
    $region17: #{tpu_custom_call.1} parent=1 // pred_fallthru
      _
    %50 = vsyncpa [#allocation3], 1
    %51 = vsyncpa [#allocation4], 1

</llo_original>
